<compile_context>
chip_gen: v7x
topology: tpu7x:2x2x1
jax: 0.10.0
libtpu: 0.0.40
codegen_flags: <defaults>
</compile_context>

<pallas_src>
import functools

import jax
import jax.numpy as jnp
import numpy as np
from jax.experimental import pallas as pl
from jax.experimental.pallas import tpu as pltpu


def _gat_kernel(doc_z_ref, word_z_ref, w_row_ref, w_col_ref, bias_ref,
                fc_bd_ref, fc_b_ref, out_ref, *, num_heads, out_dim):
    H, O = num_heads, out_dim
    doc_z = doc_z_ref[...]                       # [Nd, D] f32
    word_z = word_z_ref[...]                     # [Nw, D] f32
    Nd, D = doc_z.shape
    Nw = word_z.shape[0]

    w_row = w_row_ref[...]                       # [2H, D]: 0:H wsrc_d2w, H:2H wsrc_w2d
    w_col = w_col_ref[...]                       # [D, 2H]: 0:H wdst_d2w^T, H:2H wdst_w2d^T
    bias = bias_ref[...]                         # [2H, 1]: 0:H b_d2w,     H:2H b_w2d

    doc_z_bf = doc_z.astype(jnp.bfloat16)        # MXU aggregation operands
    word_z_bf = word_z.astype(jnp.bfloat16)

    def lrelu(x):                                # F.leaky_relu, slope 0.01: single vmax
        return jnp.maximum(x, 0.01 * x)

    def attn_softmax(x):                         # softmax over last (lane) axis, f32
        m = jnp.max(x, axis=-1, keepdims=True)
        e = jnp.exp(x - m)
        s = jnp.sum(e, axis=-1, keepdims=True)
        return e * pl.reciprocal(s, approx=True)

    cl = (((1,), (1,)), ((), ()))                # contract D (lhs dim 1) with D (rhs dim 1)

    # Per-role attention projections, each computed only in the orientation it
    # is consumed in (no unused halves).  The per-edge-type bias is folded into
    # the "src"-role rows so it is added exactly once per score.
    doc_src = jax.lax.dot_general(w_row[:H], doc_z, cl,
                                  preferred_element_type=jnp.float32) + bias[:H]   # [H, Nd]
    word_src = jax.lax.dot_general(w_row[H:], word_z, cl,
                                   preferred_element_type=jnp.float32) + bias[H:]  # [H, Nw]
    word_dst = jnp.dot(word_z, w_col[:, :H],
                       preferred_element_type=jnp.float32)                         # [Nw, H]
    doc_dst = jnp.dot(doc_z, w_col[:, H:],
                      preferred_element_type=jnp.float32)                          # [Nd, H]

    # 'include' edges (doc -> word): each word softmaxes over all docs (lanes).
    # Heads stacked on sublanes -> one batched softmax, ONE aggregation matmul.
    e_d2w = jnp.concatenate(
        [word_dst[:, h:h + 1] + doc_src[h:h + 1, :] for h in range(H)], axis=0)    # [H*Nw, Nd]
    alpha_d2w = attn_softmax(lrelu(e_d2w))
    word_agg = jnp.dot(alpha_d2w.astype(jnp.bfloat16), doc_z_bf,
                       preferred_element_type=jnp.float32)                         # [H*Nw, D]

    # 'included' edges (word -> doc): each doc softmaxes over all words (lanes).
    e_w2d = jnp.concatenate(
        [doc_dst[:, h:h + 1] + word_src[h:h + 1, :] for h in range(H)], axis=0)    # [H*Nd, Nw]
    alpha_w2d = attn_softmax(lrelu(e_w2d))
    doc_agg = jnp.dot(alpha_w2d.astype(jnp.bfloat16), word_z_bf,
                      preferred_element_type=jnp.float32)                          # [H*Nd, D]

    # Lane-dense fc slab [Nd+Nw, H*D] with heads packed on the lane axis.
    hcat_doc = jnp.concatenate(
        [doc_agg[h * Nd:(h + 1) * Nd, :] for h in range(H)], axis=-1)              # [Nd, H*D]
    hcat_word = jnp.concatenate(
        [word_agg[h * Nw:(h + 1) * Nw, :] for h in range(H)], axis=-1)             # [Nw, H*D]
    hcat = jnp.concatenate([hcat_doc, hcat_word], axis=0)                          # [Nd+Nw, H*D]

    # Block-diagonal fc across heads: single K = H*D matmul, H*O output lanes.
    # Dropout is identity (eval mode).  f32 operands (tiny, accuracy-critical).
    logits = jnp.dot(hcat, fc_bd_ref[...],
                     preferred_element_type=jnp.float32) + fc_b_ref[...]           # [Nd+Nw, H*O]

    # Per-head output softmax over its O-lane segment; exact division so each
    # output row sums to 1 (approx reciprocal stays in the attention softmax).
    outs = []
    for h in range(H):
        seg = logits[:, h * O:(h + 1) * O]
        m = jnp.max(seg, axis=-1, keepdims=True)
        e = jnp.exp(seg - m)
        outs.append(e / jnp.sum(e, axis=-1, keepdims=True))
    out_ref[...] = jnp.concatenate(outs, axis=-1)                                  # [Nd+Nw, H*O]


def multi_head_gat(doc_hidden, word_hidden, params, *, num_heads, in_dim, out_dim):
    Nd, D = doc_hidden.shape
    Nw = word_hidden.shape[0]
    H, O = num_heads, out_dim
    assert D == in_dim
    (wsrc_d2w, wdst_d2w, b_d2w, wsrc_w2d, wdst_w2d, b_w2d, fc_w, fc_b) = params

    # Pack attention params into a few dense blocks (one small DMA each):
    #   w_row [2H, D]: "src"-role weights, consumed as [H, N] row projections.
    #   w_col [D, 2H]: "dst"-role weights, consumed as [N, H] col projections.
    #   bias  [2H, 1]: per-edge-type biases, folded onto the src-role rows.
    w_row = jnp.concatenate([wsrc_d2w[:, 0, :], wsrc_w2d[:, 0, :]], axis=0)        # [2H, D]
    w_col = jnp.concatenate([wdst_d2w[:, 0, :].T, wdst_w2d[:, 0, :].T], axis=1)    # [D, 2H]
    bias = jnp.concatenate([b_d2w[:, 0, :], b_w2d[:, 0, :]], axis=0)               # [2H, 1]

    # Block-diagonal fc weight so all heads share one K = H*D matmul.
    fc_bd = jnp.zeros((H * D, H * O), jnp.float32)
    for h in range(H):
        fc_bd = fc_bd.at[h * D:(h + 1) * D, h * O:(h + 1) * O].set(fc_w[h])
    fc_b_flat = fc_b[:, 0, :].reshape(1, H * O)                                    # [1, H*O]

    kernel = functools.partial(_gat_kernel, num_heads=H, out_dim=O)

    # Grid-less call: whole graph + all heads in one invocation (toy shapes;
    # see module-level TODOs for production tiling / v7x dual-TC sharding).
    out = pl.pallas_call(
        kernel,
        out_shape=jax.ShapeDtypeStruct((Nd + Nw, H * O), jnp.float32),
        compiler_params=pltpu.CompilerParams(vmem_limit_bytes=32 * 1024 * 1024),
    )(doc_hidden, word_hidden, w_row, w_col, bias, fc_bd, fc_b_flat)

    # merge='mean' over heads + doc/word split (wrapper side, keeps the kernel
    # store lane-dense at H*O lanes).
    out = out.reshape(Nd + Nw, H, O).mean(axis=1)
    return out[:Nd], out[Nd:]


def reference(doc_z, word_z, params, num_heads):
    """Pure-JAX f32 reference mirroring the PyTorch/DGL semantics on a dense
    fully-connected bipartite graph (dropout = identity)."""
    (wsrc_d2w, wdst_d2w, b_d2w, wsrc_w2d, wdst_w2d, b_w2d, fc_w, fc_b) = params

    def lrelu(x):
        return jnp.where(x >= 0, x, 0.01 * x)

    doc_outs, word_outs = [], []
    for h in range(num_heads):
        # 'include' edges: src=doc, dst=word;  dew[i, j] for doc i, word j.
        dew = lrelu((doc_z @ wsrc_d2w[h, 0])[:, None]
                    + (word_z @ wdst_d2w[h, 0])[None, :]
                    + b_d2w[h, 0, 0])                            # [Nd, Nw]
        alpha_w = jax.nn.softmax(dew, axis=0)                    # softmax over mailbox (docs)
        word_h = alpha_w.T @ doc_z                               # [Nw, D]

        # 'included' edges: src=word, dst=doc;  wed[j, i] for word j, doc i.
        wed = lrelu((word_z @ wsrc_w2d[h, 0])[:, None]
                    + (doc_z @ wdst_w2d[h, 0])[None, :]
                    + b_w2d[h, 0, 0])                            # [Nw, Nd]
        alpha_d = jax.nn.softmax(wed, axis=0)                    # softmax over mailbox (words)
        doc_h = alpha_d.T @ word_z                               # [Nd, D]

        doc_outs.append(jax.nn.softmax(doc_h @ fc_w[h] + fc_b[h, 0], axis=1))
        word_outs.append(jax.nn.softmax(word_h @ fc_w[h] + fc_b[h, 0], axis=1))

    return (jnp.mean(jnp.stack(doc_outs, 1), 1),
            jnp.mean(jnp.stack(word_outs, 1), 1))


if __name__ == "__main__":
    Nd, Nw = 8, 16           # number of doc / word nodes
    in_dim, out_dim = 32, 16
    num_heads = 4

    key = jax.random.PRNGKey(0)
    ks = jax.random.split(key, 8)

    doc_hidden = jax.random.normal(ks[0], (Nd, in_dim), jnp.float32)
    word_hidden = jax.random.normal(ks[1], (Nw, in_dim), jnp.float32)

    # Per-head parameters (attn_fc_d2w: Linear(2*in_dim, 1), attn_fc_w2d: same,
    # fc: Linear(in_dim, out_dim)), initialized deterministically.
    w_d2w = 0.2 * jax.random.normal(ks[2], (num_heads, 2 * in_dim), jnp.float32)
    b_d2w = 0.1 * jax.random.normal(ks[3], (num_heads, 1, 1), jnp.float32)
    w_w2d = 0.2 * jax.random.normal(ks[4], (num_heads, 2 * in_dim), jnp.float32)
    b_w2d = 0.1 * jax.random.normal(ks[5], (num_heads, 1, 1), jnp.float32)
    fc_w = 0.2 * jax.random.normal(ks[6], (num_heads, in_dim, out_dim), jnp.float32)
    fc_b = 0.1 * jax.random.normal(ks[7], (num_heads, 1, out_dim), jnp.float32)

    # Split concat-attention weight into src/dst halves, shaped [H, 1, D].
    wsrc_d2w = w_d2w[:, None, :in_dim]
    wdst_d2w = w_d2w[:, None, in_dim:]
    wsrc_w2d = w_w2d[:, None, :in_dim]
    wdst_w2d = w_w2d[:, None, in_dim:]
    params = (wsrc_d2w, wdst_d2w, b_d2w, wsrc_w2d, wdst_w2d, b_w2d, fc_w, fc_b)

    doc_out, word_out = multi_head_gat(
        doc_hidden, word_hidden, params,
        num_heads=num_heads, in_dim=in_dim, out_dim=out_dim)
    jax.block_until_ready((doc_out, word_out))

    with jax.default_matmul_precision("highest"):
        doc_ref, word_ref = reference(doc_hidden, word_hidden, params, num_heads)

    # Tolerance accounts for bf16 MXU operands on the aggregation matmuls
    # (reference is full f32); observed error is well inside these bounds.
    np.testing.assert_allclose(np.asarray(doc_out), np.asarray(doc_ref),
                               rtol=2e-2, atol=2e-3)
    np.testing.assert_allclose(np.asarray(word_out), np.asarray(word_ref),
                               rtol=2e-2, atol=2e-3)

    print("KERNEL_OK")
</pallas_src>

<mosaic_0001>
module attributes {stable_mosaic.version = 11 : i64} {
  func.func @_gat_kernel(%arg0: memref<8x32xf32, #tpu.memory_space<vmem>>, %arg1: memref<16x32xf32, #tpu.memory_space<vmem>>, %arg2: memref<8x32xf32, #tpu.memory_space<vmem>>, %arg3: memref<32x8xf32, #tpu.memory_space<vmem>>, %arg4: memref<8x1xf32, #tpu.memory_space<vmem>>, %arg5: memref<128x64xf32, #tpu.memory_space<vmem>>, %arg6: memref<1x64xf32, #tpu.memory_space<vmem>>, %arg7: memref<24x64xf32, #tpu.memory_space<vmem>>) attributes {dimension_semantics = [], scalar_prefetch = 0 : i64, scratch_operands = 0 : i64, tpu.core_type = #tpu.core_type<tc>} {
    %c0 = arith.constant 0 : index
    %c0_0 = arith.constant 0 : index
    %0 = vector.load %arg0[%c0, %c0_0] : memref<8x32xf32, #tpu.memory_space<vmem>>, vector<8x32xf32>
    %c0_1 = arith.constant 0 : index
    %c0_2 = arith.constant 0 : index
    %1 = vector.load %arg1[%c0_1, %c0_2] : memref<16x32xf32, #tpu.memory_space<vmem>>, vector<16x32xf32>
    %c0_3 = arith.constant 0 : index
    %c0_4 = arith.constant 0 : index
    %2 = vector.load %arg2[%c0_3, %c0_4] : memref<8x32xf32, #tpu.memory_space<vmem>>, vector<8x32xf32>
    %c0_5 = arith.constant 0 : index
    %c0_6 = arith.constant 0 : index
    %3 = vector.load %arg3[%c0_5, %c0_6] : memref<32x8xf32, #tpu.memory_space<vmem>>, vector<32x8xf32>
    %c0_7 = arith.constant 0 : index
    %c0_8 = arith.constant 0 : index
    %4 = vector.load %arg4[%c0_7, %c0_8] : memref<8x1xf32, #tpu.memory_space<vmem>>, vector<8x1xf32>
    %5 = arith.truncf %0 : vector<8x32xf32> to vector<8x32xbf16>
    %6 = arith.truncf %1 : vector<16x32xf32> to vector<16x32xbf16>
    %7 = vector.extract_strided_slice %2 {offsets = [0, 0], sizes = [4, 32], strides = [1, 1]} : vector<8x32xf32> to vector<4x32xf32>
    %cst = arith.constant dense<0.000000e+00> : vector<4x8xf32>
    %8 = tpu.matmul %7, %0, %cst {dimension_numbers = #tpu.dot_dimension_numbers<[1], [1], [0], [0], [0, 0, 1, 0], [], []>} : vector<4x32xf32>, vector<8x32xf32>, vector<4x8xf32> -> vector<4x8xf32>
    %9 = vector.extract_strided_slice %4 {offsets = [0, 0], sizes = [4, 1], strides = [1, 1]} : vector<8x1xf32> to vector<4x1xf32>
    %10 = vector.broadcast %9 : vector<4x1xf32> to vector<4x8xf32>
    %11 = arith.addf %8, %10 : vector<4x8xf32>
    %12 = vector.extract_strided_slice %2 {offsets = [4, 0], sizes = [4, 32], strides = [1, 1]} : vector<8x32xf32> to vector<4x32xf32>
    %cst_9 = arith.constant dense<0.000000e+00> : vector<4x16xf32>
    %13 = tpu.matmul %12, %1, %cst_9 {dimension_numbers = #tpu.dot_dimension_numbers<[1], [1], [0], [0], [0, 0, 1, 0], [], []>} : vector<4x32xf32>, vector<16x32xf32>, vector<4x16xf32> -> vector<4x16xf32>
    %14 = vector.extract_strided_slice %4 {offsets = [4, 0], sizes = [4, 1], strides = [1, 1]} : vector<8x1xf32> to vector<4x1xf32>
    %15 = vector.broadcast %14 : vector<4x1xf32> to vector<4x16xf32>
    %16 = arith.addf %13, %15 : vector<4x16xf32>
    %17 = vector.extract_strided_slice %3 {offsets = [0, 0], sizes = [32, 4], strides = [1, 1]} : vector<32x8xf32> to vector<32x4xf32>
    %cst_10 = arith.constant dense<0.000000e+00> : vector<16x4xf32>
    %18 = tpu.matmul %1, %17, %cst_10 {dimension_numbers = #tpu.dot_dimension_numbers<[1], [0], [0], [1], [0, 0, 1, 1], [], []>} : vector<16x32xf32>, vector<32x4xf32>, vector<16x4xf32> -> vector<16x4xf32>
    %19 = vector.extract_strided_slice %3 {offsets = [0, 4], sizes = [32, 4], strides = [1, 1]} : vector<32x8xf32> to vector<32x4xf32>
    %cst_11 = arith.constant dense<0.000000e+00> : vector<8x4xf32>
    %20 = tpu.matmul %0, %19, %cst_11 {dimension_numbers = #tpu.dot_dimension_numbers<[1], [0], [0], [1], [0, 0, 1, 1], [], []>} : vector<8x32xf32>, vector<32x4xf32>, vector<8x4xf32> -> vector<8x4xf32>
    %21 = vector.extract_strided_slice %18 {offsets = [0, 0], sizes = [16, 1], strides = [1, 1]} : vector<16x4xf32> to vector<16x1xf32>
    %22 = vector.extract_strided_slice %11 {offsets = [0, 0], sizes = [1, 8], strides = [1, 1]} : vector<4x8xf32> to vector<1x8xf32>
    %23 = vector.broadcast %21 : vector<16x1xf32> to vector<16x8xf32>
    %24 = vector.broadcast %22 : vector<1x8xf32> to vector<16x8xf32>
    %25 = arith.addf %23, %24 : vector<16x8xf32>
    %26 = vector.extract_strided_slice %18 {offsets = [0, 1], sizes = [16, 1], strides = [1, 1]} : vector<16x4xf32> to vector<16x1xf32>
    %27 = vector.extract_strided_slice %11 {offsets = [1, 0], sizes = [1, 8], strides = [1, 1]} : vector<4x8xf32> to vector<1x8xf32>
    %28 = vector.broadcast %26 : vector<16x1xf32> to vector<16x8xf32>
    %29 = vector.broadcast %27 : vector<1x8xf32> to vector<16x8xf32>
    %30 = arith.addf %28, %29 : vector<16x8xf32>
    %31 = vector.extract_strided_slice %18 {offsets = [0, 2], sizes = [16, 1], strides = [1, 1]} : vector<16x4xf32> to vector<16x1xf32>
    %32 = vector.extract_strided_slice %11 {offsets = [2, 0], sizes = [1, 8], strides = [1, 1]} : vector<4x8xf32> to vector<1x8xf32>
    %33 = vector.broadcast %31 : vector<16x1xf32> to vector<16x8xf32>
    %34 = vector.broadcast %32 : vector<1x8xf32> to vector<16x8xf32>
    %35 = arith.addf %33, %34 : vector<16x8xf32>
    %36 = vector.extract_strided_slice %18 {offsets = [0, 3], sizes = [16, 1], strides = [1, 1]} : vector<16x4xf32> to vector<16x1xf32>
    %37 = vector.extract_strided_slice %11 {offsets = [3, 0], sizes = [1, 8], strides = [1, 1]} : vector<4x8xf32> to vector<1x8xf32>
    %38 = vector.broadcast %36 : vector<16x1xf32> to vector<16x8xf32>
    %39 = vector.broadcast %37 : vector<1x8xf32> to vector<16x8xf32>
    %40 = arith.addf %38, %39 : vector<16x8xf32>
    %41 = tpu.concatenate %25, %30, %35, %40 in 0 : vector<16x8xf32>, vector<16x8xf32>, vector<16x8xf32>, vector<16x8xf32> -> vector<64x8xf32>
    %cst_12 = arith.constant 0.00999999977 : f32
    %42 = vector.broadcast %cst_12 : f32 to vector<64x8xf32>
    %43 = arith.mulf %42, %41 : vector<64x8xf32>
    %44 = arith.maximumf %41, %43 : vector<64x8xf32>
    %cst_13 = arith.constant dense<0xFF800000> : vector<64xf32>
    %45 = vector.multi_reduction <maximumf>, %44, %cst_13 [1] : vector<64x8xf32> to vector<64xf32>
    %46 = vector.shape_cast %45 : vector<64xf32> to vector<64x1xf32>
    %47 = vector.broadcast %46 : vector<64x1xf32> to vector<64x8xf32>
    %48 = arith.subf %44, %47 : vector<64x8xf32>
    %49 = math.exp %48 : vector<64x8xf32>
    %cst_14 = arith.constant dense<0.000000e+00> : vector<64xf32>
    %50 = vector.multi_reduction <add>, %49, %cst_14 [1] : vector<64x8xf32> to vector<64xf32>
    %51 = vector.shape_cast %50 : vector<64xf32> to vector<64x1xf32>
    %52 = tpu.reciprocal %51 {approx = true} : vector<64x1xf32> -> vector<64x1xf32>
    %53 = vector.broadcast %52 : vector<64x1xf32> to vector<64x8xf32>
    %54 = arith.mulf %49, %53 : vector<64x8xf32>
    %55 = arith.truncf %54 : vector<64x8xf32> to vector<64x8xbf16>
    %cst_15 = arith.constant dense<0.000000e+00> : vector<64x32xf32>
    %56 = tpu.matmul %55, %5, %cst_15 {dimension_numbers = #tpu.dot_dimension_numbers<[1], [0], [0], [1], [0, 0, 1, 1], [], []>} : vector<64x8xbf16>, vector<8x32xbf16>, vector<64x32xf32> -> vector<64x32xf32>
    %57 = vector.extract_strided_slice %20 {offsets = [0, 0], sizes = [8, 1], strides = [1, 1]} : vector<8x4xf32> to vector<8x1xf32>
    %58 = vector.extract_strided_slice %16 {offsets = [0, 0], sizes = [1, 16], strides = [1, 1]} : vector<4x16xf32> to vector<1x16xf32>
    %59 = vector.broadcast %57 : vector<8x1xf32> to vector<8x16xf32>
    %60 = vector.broadcast %58 : vector<1x16xf32> to vector<8x16xf32>
    %61 = arith.addf %59, %60 : vector<8x16xf32>
    %62 = vector.extract_strided_slice %20 {offsets = [0, 1], sizes = [8, 1], strides = [1, 1]} : vector<8x4xf32> to vector<8x1xf32>
    %63 = vector.extract_strided_slice %16 {offsets = [1, 0], sizes = [1, 16], strides = [1, 1]} : vector<4x16xf32> to vector<1x16xf32>
    %64 = vector.broadcast %62 : vector<8x1xf32> to vector<8x16xf32>
    %65 = vector.broadcast %63 : vector<1x16xf32> to vector<8x16xf32>
    %66 = arith.addf %64, %65 : vector<8x16xf32>
    %67 = vector.extract_strided_slice %20 {offsets = [0, 2], sizes = [8, 1], strides = [1, 1]} : vector<8x4xf32> to vector<8x1xf32>
    %68 = vector.extract_strided_slice %16 {offsets = [2, 0], sizes = [1, 16], strides = [1, 1]} : vector<4x16xf32> to vector<1x16xf32>
    %69 = vector.broadcast %67 : vector<8x1xf32> to vector<8x16xf32>
    %70 = vector.broadcast %68 : vector<1x16xf32> to vector<8x16xf32>
    %71 = arith.addf %69, %70 : vector<8x16xf32>
    %72 = vector.extract_strided_slice %20 {offsets = [0, 3], sizes = [8, 1], strides = [1, 1]} : vector<8x4xf32> to vector<8x1xf32>
    %73 = vector.extract_strided_slice %16 {offsets = [3, 0], sizes = [1, 16], strides = [1, 1]} : vector<4x16xf32> to vector<1x16xf32>
    %74 = vector.broadcast %72 : vector<8x1xf32> to vector<8x16xf32>
    %75 = vector.broadcast %73 : vector<1x16xf32> to vector<8x16xf32>
    %76 = arith.addf %74, %75 : vector<8x16xf32>
    %77 = tpu.concatenate %61, %66, %71, %76 in 0 : vector<8x16xf32>, vector<8x16xf32>, vector<8x16xf32>, vector<8x16xf32> -> vector<32x16xf32>
    %cst_16 = arith.constant 0.00999999977 : f32
    %78 = vector.broadcast %cst_16 : f32 to vector<32x16xf32>
    %79 = arith.mulf %78, %77 : vector<32x16xf32>
    %80 = arith.maximumf %77, %79 : vector<32x16xf32>
    %cst_17 = arith.constant dense<0xFF800000> : vector<32xf32>
    %81 = vector.multi_reduction <maximumf>, %80, %cst_17 [1] : vector<32x16xf32> to vector<32xf32>
    %82 = vector.shape_cast %81 : vector<32xf32> to vector<32x1xf32>
    %83 = vector.broadcast %82 : vector<32x1xf32> to vector<32x16xf32>
    %84 = arith.subf %80, %83 : vector<32x16xf32>
    %85 = math.exp %84 : vector<32x16xf32>
    %cst_18 = arith.constant dense<0.000000e+00> : vector<32xf32>
    %86 = vector.multi_reduction <add>, %85, %cst_18 [1] : vector<32x16xf32> to vector<32xf32>
    %87 = vector.shape_cast %86 : vector<32xf32> to vector<32x1xf32>
    %88 = tpu.reciprocal %87 {approx = true} : vector<32x1xf32> -> vector<32x1xf32>
    %89 = vector.broadcast %88 : vector<32x1xf32> to vector<32x16xf32>
    %90 = arith.mulf %85, %89 : vector<32x16xf32>
    %91 = arith.truncf %90 : vector<32x16xf32> to vector<32x16xbf16>
    %cst_19 = arith.constant dense<0.000000e+00> : vector<32x32xf32>
    %92 = tpu.matmul %91, %6, %cst_19 {dimension_numbers = #tpu.dot_dimension_numbers<[1], [0], [0], [1], [0, 0, 1, 1], [], []>} : vector<32x16xbf16>, vector<16x32xbf16>, vector<32x32xf32> -> vector<32x32xf32>
    %93 = vector.extract_strided_slice %92 {offsets = [0, 0], sizes = [8, 32], strides = [1, 1]} : vector<32x32xf32> to vector<8x32xf32>
    %94 = vector.extract_strided_slice %92 {offsets = [8, 0], sizes = [8, 32], strides = [1, 1]} : vector<32x32xf32> to vector<8x32xf32>
    %95 = vector.extract_strided_slice %92 {offsets = [16, 0], sizes = [8, 32], strides = [1, 1]} : vector<32x32xf32> to vector<8x32xf32>
    %96 = vector.extract_strided_slice %92 {offsets = [24, 0], sizes = [8, 32], strides = [1, 1]} : vector<32x32xf32> to vector<8x32xf32>
    %97 = tpu.concatenate %93, %94, %95, %96 in 1 : vector<8x32xf32>, vector<8x32xf32>, vector<8x32xf32>, vector<8x32xf32> -> vector<8x128xf32>
    %98 = vector.extract_strided_slice %56 {offsets = [0, 0], sizes = [16, 32], strides = [1, 1]} : vector<64x32xf32> to vector<16x32xf32>
    %99 = vector.extract_strided_slice %56 {offsets = [16, 0], sizes = [16, 32], strides = [1, 1]} : vector<64x32xf32> to vector<16x32xf32>
    %100 = vector.extract_strided_slice %56 {offsets = [32, 0], sizes = [16, 32], strides = [1, 1]} : vector<64x32xf32> to vector<16x32xf32>
    %101 = vector.extract_strided_slice %56 {offsets = [48, 0], sizes = [16, 32], strides = [1, 1]} : vector<64x32xf32> to vector<16x32xf32>
    %102 = tpu.concatenate %98, %99, %100, %101 in 1 : vector<16x32xf32>, vector<16x32xf32>, vector<16x32xf32>, vector<16x32xf32> -> vector<16x128xf32>
    %103 = tpu.concatenate %97, %102 in 0 : vector<8x128xf32>, vector<16x128xf32> -> vector<24x128xf32>
    %c0_20 = arith.constant 0 : index
    %c0_21 = arith.constant 0 : index
    %104 = vector.load %arg5[%c0_20, %c0_21] : memref<128x64xf32, #tpu.memory_space<vmem>>, vector<128x64xf32>
    %cst_22 = arith.constant dense<0.000000e+00> : vector<24x64xf32>
    %105 = tpu.matmul %103, %104, %cst_22 {dimension_numbers = #tpu.dot_dimension_numbers<[1], [0], [0], [1], [0, 0, 1, 1], [], []>} : vector<24x128xf32>, vector<128x64xf32>, vector<24x64xf32> -> vector<24x64xf32>
    %c0_23 = arith.constant 0 : index
    %c0_24 = arith.constant 0 : index
    %106 = vector.load %arg6[%c0_23, %c0_24] : memref<1x64xf32, #tpu.memory_space<vmem>>, vector<1x64xf32>
    %107 = vector.broadcast %106 : vector<1x64xf32> to vector<24x64xf32>
    %108 = arith.addf %105, %107 : vector<24x64xf32>
    %109 = vector.extract_strided_slice %108 {offsets = [0, 0], sizes = [24, 16], strides = [1, 1]} : vector<24x64xf32> to vector<24x16xf32>
    %cst_25 = arith.constant dense<0xFF800000> : vector<24xf32>
    %110 = vector.multi_reduction <maximumf>, %109, %cst_25 [1] : vector<24x16xf32> to vector<24xf32>
    %111 = vector.shape_cast %110 : vector<24xf32> to vector<24x1xf32>
    %112 = vector.broadcast %111 : vector<24x1xf32> to vector<24x16xf32>
    %113 = arith.subf %109, %112 : vector<24x16xf32>
    %114 = math.exp %113 : vector<24x16xf32>
    %cst_26 = arith.constant dense<0.000000e+00> : vector<24xf32>
    %115 = vector.multi_reduction <add>, %114, %cst_26 [1] : vector<24x16xf32> to vector<24xf32>
    %116 = vector.shape_cast %115 : vector<24xf32> to vector<24x1xf32>
    %117 = vector.broadcast %116 : vector<24x1xf32> to vector<24x16xf32>
    %118 = arith.divf %114, %117 : vector<24x16xf32>
    %119 = vector.extract_strided_slice %108 {offsets = [0, 16], sizes = [24, 16], strides = [1, 1]} : vector<24x64xf32> to vector<24x16xf32>
    %cst_27 = arith.constant dense<0xFF800000> : vector<24xf32>
    %120 = vector.multi_reduction <maximumf>, %119, %cst_27 [1] : vector<24x16xf32> to vector<24xf32>
    %121 = vector.shape_cast %120 : vector<24xf32> to vector<24x1xf32>
    %122 = vector.broadcast %121 : vector<24x1xf32> to vector<24x16xf32>
    %123 = arith.subf %119, %122 : vector<24x16xf32>
    %124 = math.exp %123 : vector<24x16xf32>
    %cst_28 = arith.constant dense<0.000000e+00> : vector<24xf32>
    %125 = vector.multi_reduction <add>, %124, %cst_28 [1] : vector<24x16xf32> to vector<24xf32>
    %126 = vector.shape_cast %125 : vector<24xf32> to vector<24x1xf32>
    %127 = vector.broadcast %126 : vector<24x1xf32> to vector<24x16xf32>
    %128 = arith.divf %124, %127 : vector<24x16xf32>
    %129 = vector.extract_strided_slice %108 {offsets = [0, 32], sizes = [24, 16], strides = [1, 1]} : vector<24x64xf32> to vector<24x16xf32>
    %cst_29 = arith.constant dense<0xFF800000> : vector<24xf32>
    %130 = vector.multi_reduction <maximumf>, %129, %cst_29 [1] : vector<24x16xf32> to vector<24xf32>
    %131 = vector.shape_cast %130 : vector<24xf32> to vector<24x1xf32>
    %132 = vector.broadcast %131 : vector<24x1xf32> to vector<24x16xf32>
    %133 = arith.subf %129, %132 : vector<24x16xf32>
    %134 = math.exp %133 : vector<24x16xf32>
    %cst_30 = arith.constant dense<0.000000e+00> : vector<24xf32>
    %135 = vector.multi_reduction <add>, %134, %cst_30 [1] : vector<24x16xf32> to vector<24xf32>
    %136 = vector.shape_cast %135 : vector<24xf32> to vector<24x1xf32>
    %137 = vector.broadcast %136 : vector<24x1xf32> to vector<24x16xf32>
    %138 = arith.divf %134, %137 : vector<24x16xf32>
    %139 = vector.extract_strided_slice %108 {offsets = [0, 48], sizes = [24, 16], strides = [1, 1]} : vector<24x64xf32> to vector<24x16xf32>
    %cst_31 = arith.constant dense<0xFF800000> : vector<24xf32>
    %140 = vector.multi_reduction <maximumf>, %139, %cst_31 [1] : vector<24x16xf32> to vector<24xf32>
    %141 = vector.shape_cast %140 : vector<24xf32> to vector<24x1xf32>
    %142 = vector.broadcast %141 : vector<24x1xf32> to vector<24x16xf32>
    %143 = arith.subf %139, %142 : vector<24x16xf32>
    %144 = math.exp %143 : vector<24x16xf32>
    %cst_32 = arith.constant dense<0.000000e+00> : vector<24xf32>
    %145 = vector.multi_reduction <add>, %144, %cst_32 [1] : vector<24x16xf32> to vector<24xf32>
    %146 = vector.shape_cast %145 : vector<24xf32> to vector<24x1xf32>
    %147 = vector.broadcast %146 : vector<24x1xf32> to vector<24x16xf32>
    %148 = arith.divf %144, %147 : vector<24x16xf32>
    %149 = tpu.concatenate %118, %128, %138, %148 in 1 : vector<24x16xf32>, vector<24x16xf32>, vector<24x16xf32>, vector<24x16xf32> -> vector<24x64xf32>
    %c0_33 = arith.constant 0 : index
    %c0_34 = arith.constant 0 : index
    %150 = vector.load %arg7[%c0_33, %c0_34] : memref<24x64xf32, #tpu.memory_space<vmem>>, vector<24x64xf32>
    tpu.vector_store %arg7[%c0_33, %c0_34], %149 {strides = array<i32>} : memref<24x64xf32, #tpu.memory_space<vmem>>, vector<24x64xf32>,
    return
  }
}

</mosaic_0001>

<llo_original>
// kernel: tpu_custom_call.1
$region0: #{tpu_custom_call.1}
  #allocation0 [shape = 'u32[]', space=smem, size = 0x4, offset = 0x4, fixed_abs, tag = 'smem constant byte address 0x4 - core index']
  #allocation1 [shape = 'u32[144,128]{1,0:T(1,128)}', space=vmem, size = 0x12000, scoped, tag = 'internal scratch']
  %s0 = inlined_call_operand.vmem [shape: f32[8,32], index: 0, kind: input, shape index: {}]
  %s1 = inlined_call_operand.vmem [shape: f32[16,32], index: 1, kind: input, shape index: {}]
  %s2 = inlined_call_operand.vmem [shape: f32[8,32], index: 2, kind: input, shape index: {}]
  %s3 = inlined_call_operand.vmem [shape: f32[32,8], index: 3, kind: input, shape index: {}]
  %s4 = inlined_call_operand.vmem [shape: f32[8,1], index: 4, kind: input, shape index: {}]
  %s5 = inlined_call_operand.vmem [shape: f32[128,64], index: 5, kind: input, shape index: {}]
  %s6 = inlined_call_operand.vmem [shape: f32[1,64], index: 6, kind: input, shape index: {}]
  %s7 = inlined_call_operand.hbm [shape: f32[24,64], index: 7, kind: output, shape index: {}]
  %s8 = sld [smem:[#allocation0]]
  $region38: #{tpu_custom_call.1} parent=0
    _
  %s10 = ssub.s32 1, %s8
  %s11 = scalar_select 0, %s10, %s8
  $region1: #{tpu_custom_call.1} parent=0
    #allocation2 [shape = 'u8[12288]{0}', space=vmem, size = 0x3000, scoped, tag = 'output window, operand 0, single buffered']
    #allocation3 [shape = 's32[1]{0}', space=sflag, size = 0x4, scoped, tag = 'scoped memory for tpu_custom_call.1']
    %12 = vsyncpa [#allocation3], 0
    // Predicated region
    $region2: #{tpu_custom_call.1} parent=1 // pred_check
      _
    $region3: #{tpu_custom_call.1} parent=1 // pred_check_branch
      %14 = sbr.rel (0) target = $region5
    $region4: #{tpu_custom_call.1} parent=1 // pred_region
      _
    $region5: #{tpu_custom_call.1} parent=1 // pred_fallthru
      _
    // Predicated region
    $region6: #{tpu_custom_call.1} parent=1 // pred_check
      _
    $region7: #{tpu_custom_call.1} parent=1 // pred_check_branch
      %16 = sbr.rel (0) target = $region9
    $region8: #{tpu_custom_call.1} parent=1 // pred_region
      _
    $region9: #{tpu_custom_call.1} parent=1 // pred_fallthru
      _
    // Predicated region
    $region10: #{tpu_custom_call.1} parent=1 // pred_check
      _
    $region11: #{tpu_custom_call.1} parent=1 // pred_check_branch
      %18 = sbr.rel (0) target = $region13
    $region12: #{tpu_custom_call.1} parent=1 // pred_region
      _
    $region13: #{tpu_custom_call.1} parent=1 // pred_fallthru
      _
    // Predicated region
    $region14: #{tpu_custom_call.1} parent=1 // pred_check
      _
    $region15: #{tpu_custom_call.1} parent=1 // pred_check_branch
      %20 = sbr.rel (0) target = $region17
    $region16: #{tpu_custom_call.1} parent=1 // pred_region
      _
    $region17: #{tpu_custom_call.1} parent=1 // pred_fallthru
      _
    // Predicated region
    $region18: #{tpu_custom_call.1} parent=1 // pred_check
      _
    $region19: #{tpu_custom_call.1} parent=1 // pred_check_branch
      %22 = sbr.rel (0) target = $region21
    $region20: #{tpu_custom_call.1} parent=1 // pred_region
      _
    $region21: #{tpu_custom_call.1} parent=1 // pred_fallthru
      _
    // Predicated region
    $region22: #{tpu_custom_call.1} parent=1 // pred_check
      _
    $region23: #{tpu_custom_call.1} parent=1 // pred_check_branch
      %24 = sbr.rel (0) target = $region25
    $region24: #{tpu_custom_call.1} parent=1 // pred_region
      _
    $region25: #{tpu_custom_call.1} parent=1 // pred_fallthru
      _
    // Predicated region
    $region26: #{tpu_custom_call.1} parent=1 // pred_check
      _
    $region27: #{tpu_custom_call.1} parent=1 // pred_check_branch
      %26 = sbr.rel (0) target = $region29
    $region28: #{tpu_custom_call.1} parent=1 // pred_region
      _
    $region29: #{tpu_custom_call.1} parent=1 // pred_fallthru
      _
    %v28 = vld [vmem:[%s0] sm:$0xff]
    %v29 = vld [vmem:[%s1] sm:$0xff]
    %v30 = vld [vmem:[%s1 + $0x8] sm:$0xff]
    %v31 = vld [vmem:[%s2] sm:$0xff]
    %v32 = vld [vmem:[%s3] sm:$0xff]
    %v33 = vld [vmem:[%s3 + $0x8] sm:$0xff]
    %v34 = vld [vmem:[%s3 + $0x10] sm:$0xff]
    %v35 = vld [vmem:[%s3 + $0x18] sm:$0xff]
    %v36 = vld [vmem:[%s4] sm:$0xff]
    %v37 = vpack.c.bf16 %v28, %v28
    %v38 = vpack.c.bf16 %v30, %v29
    %40 = vset.pattern.permute.xlu0 0
    %41 = vperm.xlu0 %40, %v36
    %v42 = vpop.permute.xlu0 %41
    %vm44 = vcmask 261120
    %v46 = vsel %vm44, %v31, 0
    %v49 = vsel %vm44, %v28, 0
    %51 = vmatprep.subr.mxu0 0.0
    %52 = vmatpush1.xpose.msra.mxu0 %v49
    %53 = vmatprep.subr.mxu0 0.0
    %54 = vmatpush1.xpose.msra.mxu0 0.0
    %55 = vmatprep.subr.mxu0 0.0
    %56 = vmatpush1.xpose.msra.mxu0 0.0
    %57 = vmatprep.subr.mxu0 0.0
    %58 = vmatpush1.xpose.msra.mxu0 0.0
    %59 = vmatprep.subr.mxu0 0.0
    %60 = vmatpush1.xpose.msra.mxu0 0.0
    %61 = vmatprep.subr.mxu0 0.0
    %62 = vmatpush1.xpose.msra.mxu0 0.0
    %63 = vmatprep.subr.mxu0 0.0
    %64 = vmatpush1.xpose.msra.mxu0 0.0
    %65 = vmatprep.subr.mxu0 0.0
    %66 = vmatpush1.xpose.msra.mxu0 0.0
    %67 = vmatprep.subr.mxu0 0.0
    %68 = vmatpush1.xpose.msra.mxu0 0.0
    %69 = vmatprep.subr.mxu0 0.0
    %70 = vmatpush1.xpose.msra.mxu0 0.0
    %71 = vmatprep.subr.mxu0 0.0
    %72 = vmatpush1.xpose.msra.mxu0 0.0
    %73 = vmatprep.subr.mxu0 0.0
    %74 = vmatpush1.xpose.msra.mxu0 0.0
    %75 = vmatprep.subr.mxu0 0.0
    %76 = vmatpush1.xpose.msra.mxu0 0.0
    %77 = vmatprep.subr.mxu0 0.0
    %78 = vmatpush1.xpose.msra.mxu0 0.0
    %79 = vmatprep.subr.mxu0 0.0
    %80 = vmatpush1.xpose.msra.mxu0 0.0
    %81 = vmatprep.subr.mxu0 0.0
    %82 = vmatpush1.xpose.msra.mxu0 0.0
    %83 = vmatprep.subr.mxu0 0.0
    %84 = vmatpush1.xpose.msra.mxu0 0.0
    %85 = vmatprep.subr.mxu0 0.0
    %86 = vmatpush1.xpose.msra.mxu0 0.0
    %87 = vmatprep.subr.mxu0 0.0
    %88 = vmatpush1.xpose.msra.mxu0 0.0
    %89 = vmatprep.subr.mxu0 0.0
    %90 = vmatpush1.xpose.msra.mxu0 0.0
    %91 = vmatprep.subr.mxu0 0.0
    %92 = vmatpush1.xpose.msra.mxu0 0.0
    %93 = vmatprep.subr.mxu0 0.0
    %94 = vmatpush1.xpose.msra.mxu0 0.0
    %95 = vmatprep.subr.mxu0 0.0
    %96 = vmatpush1.xpose.msra.mxu0 0.0
    %97 = vmatprep.subr.mxu0 0.0
    %98 = vmatpush1.xpose.msra.mxu0 0.0
    %99 = vmatprep.subr.mxu0 0.0
    %100 = vmatpush1.xpose.msra.mxu0 0.0
    %101 = vmatprep.subr.mxu0 0.0
    %102 = vmatpush1.xpose.msra.mxu0 0.0
    %103 = vmatprep.subr.mxu0 0.0
    %104 = vmatpush1.xpose.msra.mxu0 0.0
    %105 = vmatprep.subr.mxu0 0.0
    %106 = vmatpush1.xpose.msra.mxu0 0.0
    %107 = vmatprep.subr.mxu0 0.0
    %108 = vmatpush1.xpose.msra.mxu0 0.0
    %109 = vmatprep.subr.mxu0 0.0
    %110 = vmatpush1.xpose.msra.mxu0 0.0
    %111 = vmatprep.subr.mxu0 0.0
    %112 = vmatpush1.xpose.msra.mxu0 0.0
    %113 = vmatprep.subr.mxu0 0.0
    %114 = vmatpush1.xpose.msra.mxu0 0.0
    %115 = vmatprep.mubr.f32.mxu0 0.0
    %116 = vmatmul.mubr.f32.gmra.mrb[0].mxu0 %v46
    %v117 = vpop.f32.mrb[0].mxu0
    %v118 = vadd.f32 %v42, %v117
    %v119 = vpop.f32.mrb[0].mxu0
    %120 = vdwg.mxu0
    %v121 = vrot.slane %v31, 4
    %v122 = vrot.slane %v42, 4
    %v124 = vsel %vm44, %v121, 0
    %v127 = vsel %vm44, %v29, 0
    %v130 = vsel %vm44, %v30, 0
    %132 = vmatprep.subr.mxu0 0.0
    %133 = vmatpush1.xpose.msra.mxu0 %v127
    %134 = vmatprep.subr.mxu0 0.0
    %135 = vmatpush1.xpose.msra.mxu0 %v130
    %136 = vmatprep.subr.mxu0 0.0
    %137 = vmatpush1.xpose.msra.mxu0 0.0
    %138 = vmatprep.subr.mxu0 0.0
    %139 = vmatpush1.xpose.msra.mxu0 0.0
    %140 = vmatprep.subr.mxu0 0.0
    %141 = vmatpush1.xpose.msra.mxu0 0.0
    %142 = vmatprep.subr.mxu0 0.0
    %143 = vmatpush1.xpose.msra.mxu0 0.0
    %144 = vmatprep.subr.mxu0 0.0
    %145 = vmatpush1.xpose.msra.mxu0 0.0
    %146 = vmatprep.subr.mxu0 0.0
    %147 = vmatpush1.xpose.msra.mxu0 0.0
    %148 = vmatprep.subr.mxu0 0.0
    %149 = vmatpush1.xpose.msra.mxu0 0.0
    %150 = vmatprep.subr.mxu0 0.0
    %151 = vmatpush1.xpose.msra.mxu0 0.0
    %152 = vmatprep.subr.mxu0 0.0
    %153 = vmatpush1.xpose.msra.mxu0 0.0
    %154 = vmatprep.subr.mxu0 0.0
    %155 = vmatpush1.xpose.msra.mxu0 0.0
    %156 = vmatprep.subr.mxu0 0.0
    %157 = vmatpush1.xpose.msra.mxu0 0.0
    %158 = vmatprep.subr.mxu0 0.0
    %159 = vmatpush1.xpose.msra.mxu0 0.0
    %160 = vmatprep.subr.mxu0 0.0
    %161 = vmatpush1.xpose.msra.mxu0 0.0
    %162 = vmatprep.subr.mxu0 0.0
    %163 = vmatpush1.xpose.msra.mxu0 0.0
    %164 = vmatprep.subr.mxu0 0.0
    %165 = vmatpush1.xpose.msra.mxu0 0.0
    %166 = vmatprep.subr.mxu0 0.0
    %167 = vmatpush1.xpose.msra.mxu0 0.0
    %168 = vmatprep.subr.mxu0 0.0
    %169 = vmatpush1.xpose.msra.mxu0 0.0
    %170 = vmatprep.subr.mxu0 0.0
    %171 = vmatpush1.xpose.msra.mxu0 0.0
    %172 = vmatprep.subr.mxu0 0.0
    %173 = vmatpush1.xpose.msra.mxu0 0.0
    %174 = vmatprep.subr.mxu0 0.0
    %175 = vmatpush1.xpose.msra.mxu0 0.0
    %176 = vmatprep.subr.mxu0 0.0
    %177 = vmatpush1.xpose.msra.mxu0 0.0
    %178 = vmatprep.subr.mxu0 0.0
    %179 = vmatpush1.xpose.msra.mxu0 0.0
    %180 = vmatprep.subr.mxu0 0.0
    %181 = vmatpush1.xpose.msra.mxu0 0.0
    %182 = vmatprep.subr.mxu0 0.0
    %183 = vmatpush1.xpose.msra.mxu0 0.0
    %184 = vmatprep.subr.mxu0 0.0
    %185 = vmatpush1.xpose.msra.mxu0 0.0
    %186 = vmatprep.subr.mxu0 0.0
    %187 = vmatpush1.xpose.msra.mxu0 0.0
    %188 = vmatprep.subr.mxu0 0.0
    %189 = vmatpush1.xpose.msra.mxu0 0.0
    %190 = vmatprep.subr.mxu0 0.0
    %191 = vmatpush1.xpose.msra.mxu0 0.0
    %192 = vmatprep.subr.mxu0 0.0
    %193 = vmatpush1.xpose.msra.mxu0 0.0
    %194 = vmatprep.subr.mxu0 0.0
    %195 = vmatpush1.xpose.msra.mxu0 0.0
    %196 = vmatprep.mubr.f32.mxu0 0.0
    %197 = vmatmul.mubr.f32.gmra.mrb[0].mxu0 %v124
    %v198 = vpop.f32.mrb[0].mxu0
    %v199 = vadd.f32 %v122, %v198
    %v200 = vpop.f32.mrb[0].mxu0
    %201 = vdwg.mxu0
    %202 = vmatprep.subr.mxu0 0.0
    %203 = vmatpush1.msra.mxu0 %v32
    %204 = vmatprep.subr.mxu0 0.0
    %205 = vmatpush1.msra.mxu0 %v33
    %206 = vmatprep.subr.mxu0 0.0
    %207 = vmatpush1.msra.mxu0 %v34
    %208 = vmatprep.subr.mxu0 0.0
    %209 = vmatpush1.msra.mxu0 %v35
    %210 = vmatprep.subr.mxu0 0.0
    %211 = vmatpush1.msra.mxu0 0.0
    %212 = vmatprep.subr.mxu0 0.0
    %213 = vmatpush1.msra.mxu0 0.0
    %214 = vmatprep.subr.mxu0 0.0
    %215 = vmatpush1.msra.mxu0 0.0
    %216 = vmatprep.subr.mxu0 0.0
    %217 = vmatpush1.msra.mxu0 0.0
    %218 = vmatprep.subr.mxu0 0.0
    %219 = vmatpush1.msra.mxu0 0.0
    %220 = vmatprep.subr.mxu0 0.0
    %221 = vmatpush1.msra.mxu0 0.0
    %222 = vmatprep.subr.mxu0 0.0
    %223 = vmatpush1.msra.mxu0 0.0
    %224 = vmatprep.subr.mxu0 0.0
    %225 = vmatpush1.msra.mxu0 0.0
    %226 = vmatprep.subr.mxu0 0.0
    %227 = vmatpush1.msra.mxu0 0.0
    %228 = vmatprep.subr.mxu0 0.0
    %229 = vmatpush1.msra.mxu0 0.0
    %230 = vmatprep.subr.mxu0 0.0
    %231 = vmatpush1.msra.mxu0 0.0
    %232 = vmatprep.subr.mxu0 0.0
    %233 = vmatpush1.msra.mxu0 0.0
    %234 = vmatprep.subr.mxu0 0.0
    %235 = vmatpush1.msra.mxu0 0.0
    %236 = vmatprep.subr.mxu0 0.0
    %237 = vmatpush1.msra.mxu0 0.0
    %238 = vmatprep.subr.mxu0 0.0
    %239 = vmatpush1.msra.mxu0 0.0
    %240 = vmatprep.subr.mxu0 0.0
    %241 = vmatpush1.msra.mxu0 0.0
    %242 = vmatprep.subr.mxu0 0.0
    %243 = vmatpush1.msra.mxu0 0.0
    %244 = vmatprep.subr.mxu0 0.0
    %245 = vmatpush1.msra.mxu0 0.0
    %246 = vmatprep.subr.mxu0 0.0
    %247 = vmatpush1.msra.mxu0 0.0
    %248 = vmatprep.subr.mxu0 0.0
    %249 = vmatpush1.msra.mxu0 0.0
    %250 = vmatprep.subr.mxu0 0.0
    %251 = vmatpush1.msra.mxu0 0.0
    %252 = vmatprep.subr.mxu0 0.0
    %253 = vmatpush1.msra.mxu0 0.0
    %254 = vmatprep.subr.mxu0 0.0
    %255 = vmatpush1.msra.mxu0 0.0
    %256 = vmatprep.subr.mxu0 0.0
    %257 = vmatpush1.msra.mxu0 0.0
    %258 = vmatprep.subr.mxu0 0.0
    %259 = vmatpush1.msra.mxu0 0.0
    %260 = vmatprep.subr.mxu0 0.0
    %261 = vmatpush1.msra.mxu0 0.0
    %262 = vmatprep.subr.mxu0 0.0
    %263 = vmatpush1.msra.mxu0 0.0
    %264 = vmatprep.subr.mxu0 0.0
    %265 = vmatpush1.msra.mxu0 0.0
    %266 = vmatprep.mubr.f32.mxu0 0.0
    %267 = vmatmul.mubr.f32.gmra.mrb[0].mxu0 %v127
    %v268 = vpop.f32.mrb[0].mxu0
    %v269 = vadd.f32 0.0, %v268
    %v270 = vpop.f32.mrb[0].mxu0
    %271 = vmatprep.mubr.f32.mxu0 0.0
    %272 = vmatmul.mubr.f32.gmra.mrb[0].mxu0 %v130
    %v273 = vpop.f32.mrb[0].mxu0
    %v274 = vadd.f32 0.0, %v273
    %v275 = vpop.f32.mrb[0].mxu0
    %276 = vdwg.mxu0
    %281 = vrot.lane.b32.xlu0 %v32, 124
    %v282 = vpop.permute.xlu0 %281
    %283 = vrot.lane.b32.xlu0 %v33, 124
    %v284 = vpop.permute.xlu0 %283
    %285 = vrot.lane.b32.xlu0 %v34, 124
    %v286 = vpop.permute.xlu0 %285
    %287 = vrot.lane.b32.xlu0 %v35, 124
    %v288 = vpop.permute.xlu0 %287
    %293 = vmatprep.subr.mxu0 0.0
    %294 = vmatpush1.msra.mxu0 %v282
    %295 = vmatprep.subr.mxu0 0.0
    %296 = vmatpush1.msra.mxu0 %v284
    %297 = vmatprep.subr.mxu0 0.0
    %298 = vmatpush1.msra.mxu0 %v286
    %299 = vmatprep.subr.mxu0 0.0
    %300 = vmatpush1.msra.mxu0 %v288
    %301 = vmatprep.subr.mxu0 0.0
    %302 = vmatpush1.msra.mxu0 0.0
    %303 = vmatprep.subr.mxu0 0.0
    %304 = vmatpush1.msra.mxu0 0.0
    %305 = vmatprep.subr.mxu0 0.0
    %306 = vmatpush1.msra.mxu0 0.0
    %307 = vmatprep.subr.mxu0 0.0
    %308 = vmatpush1.msra.mxu0 0.0
    %309 = vmatprep.subr.mxu0 0.0
    %310 = vmatpush1.msra.mxu0 0.0
    %311 = vmatprep.subr.mxu0 0.0
    %312 = vmatpush1.msra.mxu0 0.0
    %313 = vmatprep.subr.mxu0 0.0
    %314 = vmatpush1.msra.mxu0 0.0
    %315 = vmatprep.subr.mxu0 0.0
    %316 = vmatpush1.msra.mxu0 0.0
    %317 = vmatprep.subr.mxu0 0.0
    %318 = vmatpush1.msra.mxu0 0.0
    %319 = vmatprep.subr.mxu0 0.0
    %320 = vmatpush1.msra.mxu0 0.0
    %321 = vmatprep.subr.mxu0 0.0
    %322 = vmatpush1.msra.mxu0 0.0
    %323 = vmatprep.subr.mxu0 0.0
    %324 = vmatpush1.msra.mxu0 0.0
    %325 = vmatprep.subr.mxu0 0.0
    %326 = vmatpush1.msra.mxu0 0.0
    %327 = vmatprep.subr.mxu0 0.0
    %328 = vmatpush1.msra.mxu0 0.0
    %329 = vmatprep.subr.mxu0 0.0
    %330 = vmatpush1.msra.mxu0 0.0
    %331 = vmatprep.subr.mxu0 0.0
    %332 = vmatpush1.msra.mxu0 0.0
    %333 = vmatprep.subr.mxu0 0.0
    %334 = vmatpush1.msra.mxu0 0.0
    %335 = vmatprep.subr.mxu0 0.0
    %336 = vmatpush1.msra.mxu0 0.0
    %337 = vmatprep.subr.mxu0 0.0
    %338 = vmatpush1.msra.mxu0 0.0
    %339 = vmatprep.subr.mxu0 0.0
    %340 = vmatpush1.msra.mxu0 0.0
    %341 = vmatprep.subr.mxu0 0.0
    %342 = vmatpush1.msra.mxu0 0.0
    %343 = vmatprep.subr.mxu0 0.0
    %344 = vmatpush1.msra.mxu0 0.0
    %345 = vmatprep.subr.mxu0 0.0
    %346 = vmatpush1.msra.mxu0 0.0
    %347 = vmatprep.subr.mxu0 0.0
    %348 = vmatpush1.msra.mxu0 0.0
    %349 = vmatprep.subr.mxu0 0.0
    %350 = vmatpush1.msra.mxu0 0.0
    %351 = vmatprep.subr.mxu0 0.0
    %352 = vmatpush1.msra.mxu0 0.0
    %353 = vmatprep.subr.mxu0 0.0
    %354 = vmatpush1.msra.mxu0 0.0
    %355 = vmatprep.subr.mxu0 0.0
    %356 = vmatpush1.msra.mxu0 0.0
    %357 = vmatprep.mubr.f32.mxu0 0.0
    %358 = vmatmul.mubr.f32.gmra.mrb[0].mxu0 %v49
    %v359 = vpop.f32.mrb[0].mxu0
    %v360 = vadd.f32 0.0, %v359
    %v361 = vpop.f32.mrb[0].mxu0
    %362 = vdwg.mxu0
    %364 = vset.pattern.permute.xlu0 0
    %365 = vperm.xlu0 %364, %v269
    %v366 = vpop.permute.xlu0 %365
    %369 = vset.pattern.permute.xlu0 0
    %370 = vperm.xlu0 %369, %v274
    %v371 = vpop.permute.xlu0 %370
    %v373 = vlaneseq
    %v374 = vshrl.u32 %v373, 7
    %v375 = vsub.s32 0, %v374
    %v376 = vrot.slane %v118, %v375
    %v377 = vadd.f32 %v366, %v376
    %v378 = vadd.f32 %v371, %v376
    %379 = vset.pattern.permute.xlu0 1
    %380 = vperm.xlu0 %379, %v269
    %v381 = vpop.permute.xlu0 %380
    %383 = vset.pattern.permute.xlu0 1
    %384 = vperm.xlu0 %383, %v274
    %v385 = vpop.permute.xlu0 %384
    %v387 = vlaneseq
    %v388 = vshrl.u32 %v387, 7
    %v389 = vsub.s32 1, %v388
    %v390 = vrot.slane %v118, %v389
    %v391 = vadd.f32 %v381, %v390
    %v392 = vadd.f32 %v385, %v390
    %393 = vset.pattern.permute.xlu0 2
    %394 = vperm.xlu0 %393, %v269
    %v395 = vpop.permute.xlu0 %394
    %397 = vset.pattern.permute.xlu0 2
    %398 = vperm.xlu0 %397, %v274
    %v399 = vpop.permute.xlu0 %398
    %v401 = vlaneseq
    %v402 = vshrl.u32 %v401, 7
    %v403 = vsub.s32 2, %v402
    %v404 = vrot.slane %v118, %v403
    %v405 = vadd.f32 %v395, %v404
    %v406 = vadd.f32 %v399, %v404
    %407 = vset.pattern.permute.xlu0 3
    %408 = vperm.xlu0 %407, %v269
    %v409 = vpop.permute.xlu0 %408
    %411 = vset.pattern.permute.xlu0 3
    %412 = vperm.xlu0 %411, %v274
    %v413 = vpop.permute.xlu0 %412
    %v415 = vlaneseq
    %v416 = vshrl.u32 %v415, 7
    %v417 = vsub.s32 3, %v416
    %v418 = vrot.slane %v118, %v417
    %v419 = vadd.f32 %v409, %v418
    %v420 = vadd.f32 %v413, %v418
    %v421 = vmul.f32 %v377, 0.01
    %v422 = vmul.f32 %v378, 0.01
    %v423 = vmul.f32 %v391, 0.01
    %v424 = vmul.f32 %v392, 0.01
    %v425 = vmul.f32 %v405, 0.01
    %v426 = vmul.f32 %v406, 0.01
    %v427 = vmul.f32 %v419, 0.01
    %v428 = vmul.f32 %v420, 0.01
    %v429 = vmax.f32 %v377, %v421
    %v430 = vmax.f32 %v378, %v422
    %v431 = vmax.f32 %v391, %v423
    %v432 = vmax.f32 %v392, %v424
    %v433 = vmax.f32 %v405, %v425
    %v434 = vmax.f32 %v406, %v426
    %v435 = vmax.f32 %v419, %v427
    %v436 = vmax.f32 %v420, %v428
    %vm437 = vcmask 64512
    %v438 = vsel %vm437, %v429, -inf
    %439 = vmax.xlane.f32.xlu0 %v438
    %v440 = vpop.xlane.xlu0 %439
    %v441 = vsel %vm437, %v430, -inf
    %442 = vmax.xlane.f32.xlu0 %v441
    %v443 = vpop.xlane.xlu0 %442
    %v444 = vsel %vm437, %v431, -inf
    %445 = vmax.xlane.f32.xlu0 %v444
    %v446 = vpop.xlane.xlu0 %445
    %v447 = vsel %vm437, %v432, -inf
    %448 = vmax.xlane.f32.xlu0 %v447
    %v449 = vpop.xlane.xlu0 %448
    %v450 = vsel %vm437, %v433, -inf
    %451 = vmax.xlane.f32.xlu0 %v450
    %v452 = vpop.xlane.xlu0 %451
    %v453 = vsel %vm437, %v434, -inf
    %454 = vmax.xlane.f32.xlu0 %v453
    %v455 = vpop.xlane.xlu0 %454
    %v456 = vsel %vm437, %v435, -inf
    %457 = vmax.xlane.f32.xlu0 %v456
    %v458 = vpop.xlane.xlu0 %457
    %v459 = vsel %vm437, %v436, -inf
    %460 = vmax.xlane.f32.xlu0 %v459
    %v461 = vpop.xlane.xlu0 %460
    %v462 = vsub.f32 %v429, %v440
    %v463 = vsub.f32 %v430, %v443
    %v464 = vsub.f32 %v431, %v446
    %v465 = vsub.f32 %v432, %v449
    %v466 = vsub.f32 %v433, %v452
    %v467 = vsub.f32 %v434, %v455
    %v468 = vsub.f32 %v435, %v458
    %v469 = vsub.f32 %v436, %v461
    %v470 = vmul.f32 %v462, 1.442695
    %v471 = vpow.pop %v470
    %v472 = vmul.f32 %v463, 1.442695
    %v473 = vpow.pop %v472
    %v474 = vmul.f32 %v464, 1.442695
    %v475 = vpow.pop %v474
    %v476 = vmul.f32 %v465, 1.442695
    %v477 = vpow.pop %v476
    %v478 = vmul.f32 %v466, 1.442695
    %v479 = vpow.pop %v478
    %v480 = vmul.f32 %v467, 1.442695
    %v481 = vpow.pop %v480
    %v482 = vmul.f32 %v468, 1.442695
    %v483 = vpow.pop %v482
    %v484 = vmul.f32 %v469, 1.442695
    %v485 = vpow.pop %v484
    %v486 = vsel %vm437, %v471, 0.0
    %487 = vadd.xlane.f32.xlu0 %v486
    %v488 = vpop.xlane.xlu0 %487
    %v489 = vsel %vm437, %v473, 0.0
    %490 = vadd.xlane.f32.xlu0 %v489
    %v491 = vpop.xlane.xlu0 %490
    %v492 = vsel %vm437, %v475, 0.0
    %493 = vadd.xlane.f32.xlu0 %v492
    %v494 = vpop.xlane.xlu0 %493
    %v495 = vsel %vm437, %v477, 0.0
    %496 = vadd.xlane.f32.xlu0 %v495
    %v497 = vpop.xlane.xlu0 %496
    %v498 = vsel %vm437, %v479, 0.0
    %499 = vadd.xlane.f32.xlu0 %v498
    %v500 = vpop.xlane.xlu0 %499
    %v501 = vsel %vm437, %v481, 0.0
    %502 = vadd.xlane.f32.xlu0 %v501
    %v503 = vpop.xlane.xlu0 %502
    %v504 = vsel %vm437, %v483, 0.0
    %505 = vadd.xlane.f32.xlu0 %v504
    %v506 = vpop.xlane.xlu0 %505
    %v507 = vsel %vm437, %v485, 0.0
    %508 = vadd.xlane.f32.xlu0 %v507
    %v509 = vpop.xlane.xlu0 %508
    %v510 = vrcp.pop %v488
    %v511 = vrcp.pop %v491
    %v512 = vrcp.pop %v494
    %v513 = vrcp.pop %v497
    %v514 = vrcp.pop %v500
    %v515 = vrcp.pop %v503
    %v516 = vrcp.pop %v506
    %v517 = vrcp.pop %v509
    %v518 = vmul.f32 %v471, %v510
    %v519 = vmul.f32 %v473, %v511
    %v520 = vmul.f32 %v475, %v512
    %v521 = vmul.f32 %v477, %v513
    %v522 = vmul.f32 %v479, %v514
    %v523 = vmul.f32 %v481, %v515
    %v524 = vmul.f32 %v483, %v516
    %v525 = vmul.f32 %v485, %v517
    %v526 = vpack.c.bf16 %v519, %v518
    %v527 = vpack.c.bf16 %v521, %v520
    %v528 = vpack.c.bf16 %v523, %v522
    %v529 = vpack.c.bf16 %v525, %v524
    %v531 = vsel %vm437, %v526, 0
    %v534 = vsel %vm437, %v527, 0
    %v537 = vsel %vm437, %v528, 0
    %v540 = vsel %vm437, %v529, 0
    %vm542 = vcmask 1043456
    %v544 = vsel %vm542, %v37, 0
    %546 = vmatprep.subr.bf16.mxu0 0
    %547 = vmatpush1.bf16.msra.mxu0 %v544
    %548 = vmatprep.subr.bf16.mxu0 0
    %549 = vmatpush1.bf16.msra.mxu0 0
    %550 = vmatprep.subr.bf16.mxu0 0
    %551 = vmatpush1.bf16.msra.mxu0 0
    %552 = vmatprep.subr.bf16.mxu0 0
    %553 = vmatpush1.bf16.msra.mxu0 0
    %554 = vmatprep.subr.bf16.mxu0 0
    %555 = vmatpush1.bf16.msra.mxu0 0
    %556 = vmatprep.subr.bf16.mxu0 0
    %557 = vmatpush1.bf16.msra.mxu0 0
    %558 = vmatprep.subr.bf16.mxu0 0
    %559 = vmatpush1.bf16.msra.mxu0 0
    %560 = vmatprep.subr.bf16.mxu0 0
    %561 = vmatpush1.bf16.msra.mxu0 0
    %562 = vmatprep.subr.bf16.mxu0 0
    %563 = vmatpush1.bf16.msra.mxu0 0
    %564 = vmatprep.subr.bf16.mxu0 0
    %565 = vmatpush1.bf16.msra.mxu0 0
    %566 = vmatprep.subr.bf16.mxu0 0
    %567 = vmatpush1.bf16.msra.mxu0 0
    %568 = vmatprep.subr.bf16.mxu0 0
    %569 = vmatpush1.bf16.msra.mxu0 0
    %570 = vmatprep.subr.bf16.mxu0 0
    %571 = vmatpush1.bf16.msra.mxu0 0
    %572 = vmatprep.subr.bf16.mxu0 0
    %573 = vmatpush1.bf16.msra.mxu0 0
    %574 = vmatprep.subr.bf16.mxu0 0
    %575 = vmatpush1.bf16.msra.mxu0 0
    %576 = vmatprep.subr.bf16.mxu0 0
    %577 = vmatpush1.bf16.msra.mxu0 0
    %578 = vmatprep.mubr.bf16.mxu0 0
    %579 = vmatmul.mubr.bf16.gmra.mrb[0].mxu0 %v531
    %v580 = vpop.f32.mrb[0].mxu0
    %v581 = vadd.f32 0.0, %v580
    %v582 = vpop.f32.mrb[0].mxu0
    %v583 = vpop.f32.mrb[0].mxu0
    %v584 = vadd.f32 0.0, %v583
    %v585 = vpop.f32.mrb[0].mxu0
    %586 = vmatprep.mubr.bf16.mxu0 0
    %587 = vmatmul.mubr.bf16.gmra.mrb[0].mxu0 %v534
    %v588 = vpop.f32.mrb[0].mxu0
    %v589 = vadd.f32 0.0, %v588
    %v590 = vpop.f32.mrb[0].mxu0
    %v591 = vpop.f32.mrb[0].mxu0
    %v592 = vadd.f32 0.0, %v591
    %v593 = vpop.f32.mrb[0].mxu0
    %594 = vmatprep.mubr.bf16.mxu0 0
    %595 = vmatmul.mubr.bf16.gmra.mrb[0].mxu0 %v537
    %v596 = vpop.f32.mrb[0].mxu0
    %v597 = vadd.f32 0.0, %v596
    %v598 = vpop.f32.mrb[0].mxu0
    %v599 = vpop.f32.mrb[0].mxu0
    %v600 = vadd.f32 0.0, %v599
    %v601 = vpop.f32.mrb[0].mxu0
    %602 = vmatprep.mubr.bf16.mxu0 0
    %603 = vmatmul.mubr.bf16.gmra.mrb[0].mxu0 %v540
    %v604 = vpop.f32.mrb[0].mxu0
    %v605 = vadd.f32 0.0, %v604
    %v606 = vpop.f32.mrb[0].mxu0
    %v607 = vpop.f32.mrb[0].mxu0
    %v608 = vadd.f32 0.0, %v607
    %v609 = vpop.f32.mrb[0].mxu0
    %610 = vdwg.mxu0
    %612 = vset.pattern.permute.xlu0 0
    %613 = vperm.xlu0 %612, %v360
    %v614 = vpop.permute.xlu0 %613
    %v616 = vlaneseq
    %v617 = vshrl.u32 %v616, 7
    %v618 = vsub.s32 0, %v617
    %v619 = vrot.slane %v199, %v618
    %v620 = vadd.f32 %v614, %v619
    %621 = vset.pattern.permute.xlu0 1
    %622 = vperm.xlu0 %621, %v360
    %v623 = vpop.permute.xlu0 %622
    %v625 = vlaneseq
    %v626 = vshrl.u32 %v625, 7
    %v627 = vsub.s32 1, %v626
    %v628 = vrot.slane %v199, %v627
    %v629 = vadd.f32 %v623, %v628
    %630 = vset.pattern.permute.xlu0 2
    %631 = vperm.xlu0 %630, %v360
    %v632 = vpop.permute.xlu0 %631
    %v634 = vlaneseq
    %v635 = vshrl.u32 %v634, 7
    %v636 = vsub.s32 2, %v635
    %v637 = vrot.slane %v199, %v636
    %v638 = vadd.f32 %v632, %v637
    %639 = vset.pattern.permute.xlu0 3
    %640 = vperm.xlu0 %639, %v360
    %v641 = vpop.permute.xlu0 %640
    %v643 = vlaneseq
    %v644 = vshrl.u32 %v643, 7
    %v645 = vsub.s32 3, %v644
    %v646 = vrot.slane %v199, %v645
    %v647 = vadd.f32 %v641, %v646
    %v648 = vmul.f32 %v620, 0.01
    %v649 = vmul.f32 %v629, 0.01
    %v650 = vmul.f32 %v638, 0.01
    %v651 = vmul.f32 %v647, 0.01
    %v652 = vmax.f32 %v620, %v648
    %v653 = vmax.f32 %v629, %v649
    %v654 = vmax.f32 %v638, %v650
    %v655 = vmax.f32 %v647, %v651
    %vm656 = vcmask 130048
    %v657 = vsel %vm656, %v652, -inf
    %658 = vmax.xlane.f32.xlu0 %v657
    %v659 = vpop.xlane.xlu0 %658
    %v660 = vsel %vm656, %v653, -inf
    %661 = vmax.xlane.f32.xlu0 %v660
    %v662 = vpop.xlane.xlu0 %661
    %v663 = vsel %vm656, %v654, -inf
    %664 = vmax.xlane.f32.xlu0 %v663
    %v665 = vpop.xlane.xlu0 %664
    %v666 = vsel %vm656, %v655, -inf
    %667 = vmax.xlane.f32.xlu0 %v666
    %v668 = vpop.xlane.xlu0 %667
    %v669 = vsub.f32 %v652, %v659
    %v670 = vsub.f32 %v653, %v662
    %v671 = vsub.f32 %v654, %v665
    %v672 = vsub.f32 %v655, %v668
    %v673 = vmul.f32 %v669, 1.442695
    %v674 = vpow.pop %v673
    %v675 = vmul.f32 %v670, 1.442695
    %v676 = vpow.pop %v675
    %v677 = vmul.f32 %v671, 1.442695
    %v678 = vpow.pop %v677
    %v679 = vmul.f32 %v672, 1.442695
    %v680 = vpow.pop %v679
    %v681 = vsel %vm656, %v674, 0.0
    %682 = vadd.xlane.f32.xlu0 %v681
    %v683 = vpop.xlane.xlu0 %682
    %v684 = vsel %vm656, %v676, 0.0
    %685 = vadd.xlane.f32.xlu0 %v684
    %v686 = vpop.xlane.xlu0 %685
    %v687 = vsel %vm656, %v678, 0.0
    %688 = vadd.xlane.f32.xlu0 %v687
    %v689 = vpop.xlane.xlu0 %688
    %v690 = vsel %vm656, %v680, 0.0
    %691 = vadd.xlane.f32.xlu0 %v690
    %v692 = vpop.xlane.xlu0 %691
    %v693 = vrcp.pop %v683
    %v694 = vrcp.pop %v686
    %v695 = vrcp.pop %v689
    %v696 = vrcp.pop %v692
    %v697 = vmul.f32 %v674, %v693
    %v698 = vmul.f32 %v676, %v694
    %v699 = vmul.f32 %v678, %v695
    %v700 = vmul.f32 %v680, %v696
    %v701 = vpack.c.bf16 %v698, %v697
    %v702 = vpack.c.bf16 %v700, %v699
    %v704 = vsel %vm656, %v701, 0
    %v707 = vsel %vm656, %v702, 0
    %709 = vmatprep.subr.bf16.mxu0 0
    %710 = vmatpush1.bf16.msra.mxu0 %v38
    %711 = vmatprep.subr.bf16.mxu0 0
    %712 = vmatpush1.bf16.msra.mxu0 0
    %713 = vmatprep.subr.bf16.mxu0 0
    %714 = vmatpush1.bf16.msra.mxu0 0
    %715 = vmatprep.subr.bf16.mxu0 0
    %716 = vmatpush1.bf16.msra.mxu0 0
    %717 = vmatprep.subr.bf16.mxu0 0
    %718 = vmatpush1.bf16.msra.mxu0 0
    %719 = vmatprep.subr.bf16.mxu0 0
    %720 = vmatpush1.bf16.msra.mxu0 0
    %721 = vmatprep.subr.bf16.mxu0 0
    %722 = vmatpush1.bf16.msra.mxu0 0
    %723 = vmatprep.subr.bf16.mxu0 0
    %724 = vmatpush1.bf16.msra.mxu0 0
    %725 = vmatprep.subr.bf16.mxu0 0
    %726 = vmatpush1.bf16.msra.mxu0 0
    %727 = vmatprep.subr.bf16.mxu0 0
    %728 = vmatpush1.bf16.msra.mxu0 0
    %729 = vmatprep.subr.bf16.mxu0 0
    %730 = vmatpush1.bf16.msra.mxu0 0
    %731 = vmatprep.subr.bf16.mxu0 0
    %732 = vmatpush1.bf16.msra.mxu0 0
    %733 = vmatprep.subr.bf16.mxu0 0
    %734 = vmatpush1.bf16.msra.mxu0 0
    %735 = vmatprep.subr.bf16.mxu0 0
    %736 = vmatpush1.bf16.msra.mxu0 0
    %737 = vmatprep.subr.bf16.mxu0 0
    %738 = vmatpush1.bf16.msra.mxu0 0
    %739 = vmatprep.subr.bf16.mxu0 0
    %740 = vmatpush1.bf16.msra.mxu0 0
    %741 = vmatprep.mubr.bf16.mxu0 0
    %742 = vmatmul.mubr.bf16.gmra.mrb[0].mxu0 %v704
    %v743 = vpop.f32.mrb[0].mxu0
    %v744 = vadd.f32 0.0, %v743
    %v745 = vpop.f32.mrb[0].mxu0
    %v746 = vpop.f32.mrb[0].mxu0
    %v747 = vadd.f32 0.0, %v746
    %v748 = vpop.f32.mrb[0].mxu0
    %749 = vmatprep.mubr.bf16.mxu0 0
    %750 = vmatmul.mubr.bf16.gmra.mrb[0].mxu0 %v707
    %v751 = vpop.f32.mrb[0].mxu0
    %v752 = vadd.f32 0.0, %v751
    %v753 = vpop.f32.mrb[0].mxu0
    %v754 = vpop.f32.mrb[0].mxu0
    %v755 = vadd.f32 0.0, %v754
    %v756 = vpop.f32.mrb[0].mxu0
    %757 = vdwg.mxu0
    %759 = vrot.lane.b32.xlu0 %v747, 32
    %v760 = vpop.permute.xlu0 %759
    %763 = vrot.lane.b32.xlu0 %v752, 64
    %v764 = vpop.permute.xlu0 %763
    %767 = vrot.lane.b32.xlu0 %v755, 96
    %v768 = vpop.permute.xlu0 %767
    %v770 = vsel %vm44, %v744, %v760
    %vm771 = vcmask 523264
    %v772 = vsel %vm771, %v770, %v764
    %vm773 = vcmask 785408
    %v774 = vsel %vm773, %v772, %v768
    %777 = vrot.lane.b32.xlu0 %v589, 32
    %v778 = vpop.permute.xlu0 %777
    %779 = vrot.lane.b32.xlu0 %v592, 32
    %v780 = vpop.permute.xlu0 %779
    %785 = vrot.lane.b32.xlu0 %v597, 64
    %v786 = vpop.permute.xlu0 %785
    %787 = vrot.lane.b32.xlu0 %v600, 64
    %v788 = vpop.permute.xlu0 %787
    %793 = vrot.lane.b32.xlu0 %v605, 96
    %v794 = vpop.permute.xlu0 %793
    %795 = vrot.lane.b32.xlu0 %v608, 96
    %v796 = vpop.permute.xlu0 %795
    %v799 = vsel %vm44, %v581, %v778
    %v800 = vsel %vm44, %v584, %v780
    %v801 = vsel %vm771, %v799, %v786
    %v802 = vsel %vm771, %v800, %v788
    %v803 = vsel %vm773, %v801, %v794
    %v804 = vsel %vm773, %v802, %v796
    %v805 = vld [vmem:[%s5] sm:$0xff]
    %v806 = vld [vmem:[%s5 + $0x8] sm:$0xff]
    %v807 = vld [vmem:[%s5 + $0x10] sm:$0xff]
    %v808 = vld [vmem:[%s5 + $0x18] sm:$0xff]
    %v809 = vld [vmem:[%s5 + $0x20] sm:$0xff]
    %v810 = vld [vmem:[%s5 + $0x28] sm:$0xff]
    %v811 = vld [vmem:[%s5 + $0x30] sm:$0xff]
    %v812 = vld [vmem:[%s5 + $0x38] sm:$0xff]
    %v813 = vld [vmem:[%s5 + $0x40] sm:$0xff]
    %v814 = vld [vmem:[%s5 + $0x48] sm:$0xff]
    %v815 = vld [vmem:[%s5 + $0x50] sm:$0xff]
    %v816 = vld [vmem:[%s5 + $0x58] sm:$0xff]
    %v817 = vld [vmem:[%s5 + $0x60] sm:$0xff]
    %v818 = vld [vmem:[%s5 + $0x68] sm:$0xff]
    %v819 = vld [vmem:[%s5 + $0x70] sm:$0xff]
    %v820 = vld [vmem:[%s5 + $0x78] sm:$0xff]
    %v821 = vld [vmem:[%s6] sm:$0x1]
    %v823 = vlaneseq
    %v824 = vshrl.u32 %v823, 7
    %v825 = vsub.s32 0, %v824
    %v826 = vrot.slane %v821, %v825
    %828 = vmatprep.subr.mxu0 0.0
    %829 = vmatpush1.msra.mxu0 %v805
    %830 = vmatprep.subr.mxu0 0.0
    %831 = vmatpush1.msra.mxu0 %v806
    %832 = vmatprep.subr.mxu0 0.0
    %833 = vmatpush1.msra.mxu0 %v807
    %834 = vmatprep.subr.mxu0 0.0
    %835 = vmatpush1.msra.mxu0 %v808
    %836 = vmatprep.subr.mxu0 0.0
    %837 = vmatpush1.msra.mxu0 %v809
    %838 = vmatprep.subr.mxu0 0.0
    %839 = vmatpush1.msra.mxu0 %v810
    %840 = vmatprep.subr.mxu0 0.0
    %841 = vmatpush1.msra.mxu0 %v811
    %842 = vmatprep.subr.mxu0 0.0
    %843 = vmatpush1.msra.mxu0 %v812
    %844 = vmatprep.subr.mxu0 0.0
    %845 = vmatpush1.msra.mxu0 %v813
    %846 = vmatprep.subr.mxu0 0.0
    %847 = vmatpush1.msra.mxu0 %v814
    %848 = vmatprep.subr.mxu0 0.0
    %849 = vmatpush1.msra.mxu0 %v815
    %850 = vmatprep.subr.mxu0 0.0
    %851 = vmatpush1.msra.mxu0 %v816
    %852 = vmatprep.subr.mxu0 0.0
    %853 = vmatpush1.msra.mxu0 %v817
    %854 = vmatprep.subr.mxu0 0.0
    %855 = vmatpush1.msra.mxu0 %v818
    %856 = vmatprep.subr.mxu0 0.0
    %857 = vmatpush1.msra.mxu0 %v819
    %858 = vmatprep.subr.mxu0 0.0
    %859 = vmatpush1.msra.mxu0 %v820
    %860 = vmatprep.subr.mxu0 0.0
    %861 = vmatpush1.msra.mxu0 0.0
    %862 = vmatprep.subr.mxu0 0.0
    %863 = vmatpush1.msra.mxu0 0.0
    %864 = vmatprep.subr.mxu0 0.0
    %865 = vmatpush1.msra.mxu0 0.0
    %866 = vmatprep.subr.mxu0 0.0
    %867 = vmatpush1.msra.mxu0 0.0
    %868 = vmatprep.subr.mxu0 0.0
    %869 = vmatpush1.msra.mxu0 0.0
    %870 = vmatprep.subr.mxu0 0.0
    %871 = vmatpush1.msra.mxu0 0.0
    %872 = vmatprep.subr.mxu0 0.0
    %873 = vmatpush1.msra.mxu0 0.0
    %874 = vmatprep.subr.mxu0 0.0
    %875 = vmatpush1.msra.mxu0 0.0
    %876 = vmatprep.subr.mxu0 0.0
    %877 = vmatpush1.msra.mxu0 0.0
    %878 = vmatprep.subr.mxu0 0.0
    %879 = vmatpush1.msra.mxu0 0.0
    %880 = vmatprep.subr.mxu0 0.0
    %881 = vmatpush1.msra.mxu0 0.0
    %882 = vmatprep.subr.mxu0 0.0
    %883 = vmatpush1.msra.mxu0 0.0
    %884 = vmatprep.subr.mxu0 0.0
    %885 = vmatpush1.msra.mxu0 0.0
    %886 = vmatprep.subr.mxu0 0.0
    %887 = vmatpush1.msra.mxu0 0.0
    %888 = vmatprep.subr.mxu0 0.0
    %889 = vmatpush1.msra.mxu0 0.0
    %890 = vmatprep.subr.mxu0 0.0
    %891 = vmatpush1.msra.mxu0 0.0
    %892 = vmatprep.mubr.f32.mxu0 0.0
    %893 = vmatmul.mubr.f32.gmra.mrb[0].mxu0 %v774
    %v894 = vpop.f32.mrb[0].mxu0
    %v895 = vadd.f32 %v826, %v894
    %v896 = vpop.f32.mrb[0].mxu0
    %897 = vmatprep.mubr.f32.mxu0 0.0
    %898 = vmatmul.mubr.f32.gmra.mrb[0].mxu0 %v803
    %v899 = vpop.f32.mrb[0].mxu0
    %v900 = vadd.f32 %v826, %v899
    %v901 = vpop.f32.mrb[0].mxu0
    %902 = vmatprep.mubr.f32.mxu0 0.0
    %903 = vmatmul.mubr.f32.gmra.mrb[0].mxu0 %v804
    %v904 = vpop.f32.mrb[0].mxu0
    %v905 = vadd.f32 %v826, %v904
    %v906 = vpop.f32.mrb[0].mxu0
    %907 = vdwg.mxu0
    %v908 = vsel %vm656, %v895, -inf
    %909 = vmax.xlane.f32.xlu0 %v908
    %v910 = vpop.xlane.xlu0 %909
    %v911 = vsel %vm656, %v900, -inf
    %912 = vmax.xlane.f32.xlu0 %v911
    %v913 = vpop.xlane.xlu0 %912
    %v914 = vsel %vm656, %v905, -inf
    %915 = vmax.xlane.f32.xlu0 %v914
    %v916 = vpop.xlane.xlu0 %915
    %v917 = vsub.f32 %v895, %v910
    %v918 = vsub.f32 %v900, %v913
    %v919 = vsub.f32 %v905, %v916
    %v920 = vmul.f32 %v917, 1.442695
    %v921 = vpow.pop %v920
    %v922 = vmul.f32 %v918, 1.442695
    %v923 = vpow.pop %v922
    %v924 = vmul.f32 %v919, 1.442695
    %v925 = vpow.pop %v924
    %v926 = vsel %vm656, %v921, 0.0
    %927 = vadd.xlane.f32.xlu0 %v926
    %v928 = vpop.xlane.xlu0 %927
    %v929 = vsel %vm656, %v923, 0.0
    %930 = vadd.xlane.f32.xlu0 %v929
    %v931 = vpop.xlane.xlu0 %930
    %v932 = vsel %vm656, %v925, 0.0
    %933 = vadd.xlane.f32.xlu0 %v932
    %v934 = vpop.xlane.xlu0 %933
    %v935 = vrcp.pop %v928
    %v936 = vmul.f32 %v921, %v935
    %v937 = vrcp.pop %v931
    %v938 = vmul.f32 %v923, %v937
    %v939 = vrcp.pop %v934
    %v940 = vmul.f32 %v925, %v939
    %vm941 = vcmask 261248
    %v942 = vsel %vm941, %v895, -inf
    %943 = vmax.xlane.f32.xlu0 %v942
    %v944 = vpop.xlane.xlu0 %943
    %v945 = vsel %vm941, %v900, -inf
    %946 = vmax.xlane.f32.xlu0 %v945
    %v947 = vpop.xlane.xlu0 %946
    %v948 = vsel %vm941, %v905, -inf
    %949 = vmax.xlane.f32.xlu0 %v948
    %v950 = vpop.xlane.xlu0 %949
    %v951 = vsub.f32 %v895, %v944
    %v952 = vsub.f32 %v900, %v947
    %v953 = vsub.f32 %v905, %v950
    %v954 = vmul.f32 %v951, 1.442695
    %v955 = vpow.pop %v954
    %v956 = vmul.f32 %v952, 1.442695
    %v957 = vpow.pop %v956
    %v958 = vmul.f32 %v953, 1.442695
    %v959 = vpow.pop %v958
    %963 = vrot.lane.b32.xlu0 %v955, 112
    %v964 = vpop.permute.xlu0 %963
    %965 = vrot.lane.b32.xlu0 %v957, 112
    %v966 = vpop.permute.xlu0 %965
    %967 = vrot.lane.b32.xlu0 %v959, 112
    %v968 = vpop.permute.xlu0 %967
    %v972 = vsel %vm656, %v964, 0.0
    %973 = vadd.xlane.f32.xlu0 %v972
    %v974 = vpop.xlane.xlu0 %973
    %v975 = vsel %vm656, %v966, 0.0
    %976 = vadd.xlane.f32.xlu0 %v975
    %v977 = vpop.xlane.xlu0 %976
    %v978 = vsel %vm656, %v968, 0.0
    %979 = vadd.xlane.f32.xlu0 %v978
    %v980 = vpop.xlane.xlu0 %979
    %v981 = vrcp.pop %v974
    %v982 = vmul.f32 %v955, %v981
    %v983 = vrcp.pop %v977
    %v984 = vmul.f32 %v957, %v983
    %v985 = vrcp.pop %v980
    %v986 = vmul.f32 %v959, %v985
    %vm987 = vcmask 392448
    %v988 = vsel %vm987, %v895, -inf
    %989 = vmax.xlane.f32.xlu0 %v988
    %v990 = vpop.xlane.xlu0 %989
    %v991 = vsel %vm987, %v900, -inf
    %992 = vmax.xlane.f32.xlu0 %v991
    %v993 = vpop.xlane.xlu0 %992
    %v994 = vsel %vm987, %v905, -inf
    %995 = vmax.xlane.f32.xlu0 %v994
    %v996 = vpop.xlane.xlu0 %995
    %v997 = vsub.f32 %v895, %v990
    %v998 = vsub.f32 %v900, %v993
    %v999 = vsub.f32 %v905, %v996
    %v1000 = vmul.f32 %v997, 1.442695
    %v1001 = vpow.pop %v1000
    %v1002 = vmul.f32 %v998, 1.442695
    %v1003 = vpow.pop %v1002
    %v1004 = vmul.f32 %v999, 1.442695
    %v1005 = vpow.pop %v1004
    %1009 = vrot.lane.b32.xlu0 %v1001, 96
    %v1010 = vpop.permute.xlu0 %1009
    %1011 = vrot.lane.b32.xlu0 %v1003, 96
    %v1012 = vpop.permute.xlu0 %1011
    %1013 = vrot.lane.b32.xlu0 %v1005, 96
    %v1014 = vpop.permute.xlu0 %1013
    %v1018 = vsel %vm656, %v1010, 0.0
    %1019 = vadd.xlane.f32.xlu0 %v1018
    %v1020 = vpop.xlane.xlu0 %1019
    %v1021 = vsel %vm656, %v1012, 0.0
    %1022 = vadd.xlane.f32.xlu0 %v1021
    %v1023 = vpop.xlane.xlu0 %1022
    %v1024 = vsel %vm656, %v1014, 0.0
    %1025 = vadd.xlane.f32.xlu0 %v1024
    %v1026 = vpop.xlane.xlu0 %1025
    %v1027 = vrcp.pop %v1020
    %v1028 = vmul.f32 %v1001, %v1027
    %v1029 = vrcp.pop %v1023
    %v1030 = vmul.f32 %v1003, %v1029
    %v1031 = vrcp.pop %v1026
    %v1032 = vmul.f32 %v1005, %v1031
    %vm1033 = vcmask 523648
    %v1034 = vsel %vm1033, %v895, -inf
    %1035 = vmax.xlane.f32.xlu0 %v1034
    %v1036 = vpop.xlane.xlu0 %1035
    %v1037 = vsel %vm1033, %v900, -inf
    %1038 = vmax.xlane.f32.xlu0 %v1037
    %v1039 = vpop.xlane.xlu0 %1038
    %v1040 = vsel %vm1033, %v905, -inf
    %1041 = vmax.xlane.f32.xlu0 %v1040
    %v1042 = vpop.xlane.xlu0 %1041
    %v1043 = vsub.f32 %v895, %v1036
    %v1044 = vsub.f32 %v900, %v1039
    %v1045 = vsub.f32 %v905, %v1042
    %v1046 = vmul.f32 %v1043, 1.442695
    %v1047 = vpow.pop %v1046
    %v1048 = vmul.f32 %v1044, 1.442695
    %v1049 = vpow.pop %v1048
    %v1050 = vmul.f32 %v1045, 1.442695
    %v1051 = vpow.pop %v1050
    %1055 = vrot.lane.b32.xlu0 %v1047, 80
    %v1056 = vpop.permute.xlu0 %1055
    %1057 = vrot.lane.b32.xlu0 %v1049, 80
    %v1058 = vpop.permute.xlu0 %1057
    %1059 = vrot.lane.b32.xlu0 %v1051, 80
    %v1060 = vpop.permute.xlu0 %1059
    %v1064 = vsel %vm656, %v1056, 0.0
    %1065 = vadd.xlane.f32.xlu0 %v1064
    %v1066 = vpop.xlane.xlu0 %1065
    %v1067 = vsel %vm656, %v1058, 0.0
    %1068 = vadd.xlane.f32.xlu0 %v1067
    %v1069 = vpop.xlane.xlu0 %1068
    %v1070 = vsel %vm656, %v1060, 0.0
    %1071 = vadd.xlane.f32.xlu0 %v1070
    %v1072 = vpop.xlane.xlu0 %1071
    %v1073 = vrcp.pop %v1066
    %v1074 = vmul.f32 %v1047, %v1073
    %v1075 = vrcp.pop %v1069
    %v1076 = vmul.f32 %v1049, %v1075
    %v1077 = vrcp.pop %v1072
    %v1078 = vmul.f32 %v1051, %v1077
    %v1079 = vsel %vm656, %v936, %v982
    %v1080 = vsel %vm656, %v938, %v984
    %v1081 = vsel %vm656, %v940, %v986
    %v1082 = vsel %vm44, %v1079, %v1028
    %v1083 = vsel %vm44, %v1080, %v1030
    %v1084 = vsel %vm44, %v1081, %v1032
    %vm1085 = vcmask 392192
    %v1086 = vsel %vm1085, %v1082, %v1074
    %v1087 = vsel %vm1085, %v1083, %v1076
    %v1088 = vsel %vm1085, %v1084, %v1078
    %1089 = vst.msk [vmem:[#allocation2] sm:$0xff] %vm771, %v1086
    %1090 = vst.msk [vmem:[#allocation2 + $0x8] sm:$0xff] %vm771, %v1087
    %1091 = vst.msk [vmem:[#allocation2 + $0x10] sm:$0xff] %vm771, %v1088
    // Predicated region
    $region30: #{tpu_custom_call.1} parent=1 // pred_check
      _
    $region31: #{tpu_custom_call.1} parent=1 // pred_check_branch
      %1093 = sbr.rel (0) target = $region33
    $region32: #{tpu_custom_call.1} parent=1 // pred_region
      %s1095 = ssub.s32 384, 384
      %1096 = vsyncadd [#allocation3], %s1095
      %s1097 = sshll.u32 [#allocation2], 4
      %s1098 = int_to_ptr.vmem [resolvable:$true] %s1097
      %1103 = dma.vmem_to_hbm [thread:$0]  %s1098, 384, %s7, [#allocation3], 128, 128, 8
    $region33: #{tpu_custom_call.1} parent=1 // pred_fallthru
      _
    // Predicated region
    $region34: #{tpu_custom_call.1} parent=1 // pred_check
      _
    $region35: #{tpu_custom_call.1} parent=1 // pred_check_branch
      %1105 = sbr.rel (0) target = $region37
    $region36: #{tpu_custom_call.1} parent=1 // pred_region
      %1106 = dma.done [#allocation3], 384
    $region37: #{tpu_custom_call.1} parent=1 // pred_fallthru
      _
    %1107 = vsyncpa [#allocation3], 1

</llo_original>
